<compile_context>
chip_gen: v5e
topology: v5e:2x2
jax: 0.10.0
libtpu: 0.0.40
codegen_flags: <defaults>
</compile_context>

<pallas_src>
import functools

import jax
import jax.numpy as jnp
from jax import lax
from jax.experimental import pallas as pl
from jax.experimental.pallas import tpu as pltpu

LANES = 128
SUBLANES = 8
MAX_TILE_ROWS = 2048  # 2048 x 128 f32 = 1 MiB per block (2 MiB double-buffered)


def _round_up(v, m):
    return ((v + m - 1) // m) * m


def _onesided_kernel(x_ref, o_ref, acc_ref, *, m_rows, tile_rows, inv_n, needs_mask):
    i = pl.program_id(0)

    @pl.when(i == 0)
    def _():
        acc_ref[...] = jnp.zeros_like(acc_ref)

    # Upcast in-kernel (free on the VPU); HBM traffic stays in the native dtype.
    x = x_ref[...].astype(jnp.float32)          # (tile_rows, 128)
    r = jnp.maximum(-x, 0.0)                    # relu(-x)

    if needs_mask:
        # Boundary-block rows past m_rows contain unspecified data -> zero them.
        row = lax.broadcasted_iota(jnp.int32, (tile_rows, 1), 0) + i * tile_rows
        r = jnp.where(row < m_rows, r, 0.0)

    # Pure-VPU partial reduction into an (8, 128) vector accumulator: collapse only
    # the vreg-count axis; no XLU tree-reduce / serial SMEM scalar in the hot loop.
    acc_ref[...] += jnp.sum(r.reshape(tile_rows // SUBLANES, SUBLANES, LANES), axis=0)

    @pl.when(i == pl.num_programs(0) - 1)
    def _():
        # Single cross-lane reduce + scale: out = -sum(relu(-x)) / n
        o_ref[0, 0] = -jnp.sum(acc_ref[...]) * jnp.float32(inv_n)


def one_sided(x):
    """Pallas equivalent of OneSided.forward: returns scalar -mean(relu(-x))."""
    n = x.size
    flat = x.reshape(-1)

    rem = n % LANES
    if rem:
        # Only the (<128-element) ragged tail is padded; zeros are inert for relu(-x).
        flat = jnp.pad(flat, (0, LANES - rem))
    slab = flat.reshape(-1, LANES)              # (M, 128), native dtype
    m = slab.shape[0]

    # Sublane packing multiple depends on dtype (f32: 8, bf16: 16, int8/fp8: 32).
    sub_mult = max(SUBLANES, 32 // jnp.dtype(slab.dtype).itemsize)
    tile_rows = min(MAX_TILE_ROWS, _round_up(m, sub_mult))
    grid = (pl.cdiv(m, tile_rows),)
    needs_mask = (m % tile_rows) != 0

    kernel = functools.partial(
        _onesided_kernel,
        m_rows=m,
        tile_rows=tile_rows,
        inv_n=1.0 / float(n),
        needs_mask=needs_mask,
    )

    out = pl.pallas_call(
        kernel,
        out_shape=jax.ShapeDtypeStruct((1, 1), jnp.float32),
        grid_spec=pltpu.PrefetchScalarGridSpec(
            num_scalar_prefetch=0,
            grid=grid,
            in_specs=[pl.BlockSpec((tile_rows, LANES), lambda i: (i, 0))],
            out_specs=pl.BlockSpec(memory_space=pltpu.SMEM),
            scratch_shapes=[pltpu.VMEM((SUBLANES, LANES), jnp.float32)],
        ),
        compiler_params=pltpu.CompilerParams(
            dimension_semantics=("arbitrary",)),
    )(slab)
    return out[0, 0]


if __name__ == "__main__":
    key = jax.random.PRNGKey(0)
    x = jax.random.normal(key, (2, 4, 16, 16), dtype=jnp.float32)  # NCHW

    result = one_sided(x)
    jax.block_until_ready(result)

    # Reference check in plain JAX.
    ref = -jnp.mean(jnp.maximum(-x, 0.0))
    assert jnp.allclose(result, ref, atol=1e-6, rtol=1e-5), (result, ref)

    print("KERNEL_OK")
</pallas_src>

<mosaic_0001>
module attributes {stable_mosaic.version = 11 : i64} {
  func.func @_onesided_kernel(%arg0: i32, %arg1: memref<16x128xf32, #tpu.memory_space<vmem>>, %arg2: memref<1x1xf32, #tpu.memory_space<smem>>, %arg3: memref<8x128xf32, #tpu.memory_space<vmem>>) attributes {dimension_semantics = [#tpu.dimension_semantics<arbitrary>], iteration_bounds = array<i64: 1>, scalar_prefetch = 0 : i64, scratch_operands = 1 : i64, tpu.core_type = #tpu.core_type<tc>, window_params = [{transform_indices = @transform_0, window_bounds = array<i64: 16, 128>}, {transform_indices = @transform_1, window_bounds = array<i64: 1, 1>}]} {
    %c0_i32 = arith.constant 0 : i32
    %0 = arith.cmpi eq, %arg0, %c0_i32 : i32
    %1 = arith.extui %0 : i1 to i32
    %c0_i32_0 = arith.constant 0 : i32
    %2 = arith.cmpi ne, %1, %c0_i32_0 : i32
    scf.if %2 {
      %cst_10 = arith.constant 0.000000e+00 : f32
      %16 = vector.broadcast %cst_10 : f32 to vector<8x128xf32>
      %c0_11 = arith.constant 0 : index
      %c0_12 = arith.constant 0 : index
      %17 = vector.load %arg3[%c0_11, %c0_12] : memref<8x128xf32, #tpu.memory_space<vmem>>, vector<8x128xf32>
      tpu.vector_store %arg3[%c0_11, %c0_12], %16 {strides = array<i32>} : memref<8x128xf32, #tpu.memory_space<vmem>>, vector<8x128xf32>,
    } else {
    }
    %c0 = arith.constant 0 : index
    %c0_1 = arith.constant 0 : index
    %3 = vector.load %arg1[%c0, %c0_1] : memref<16x128xf32, #tpu.memory_space<vmem>>, vector<16x128xf32>
    %cst = arith.constant 0.000000e+00 : f32
    %4 = vector.broadcast %cst : f32 to vector<16x128xf32>
    %5 = arith.subf %4, %3 : vector<16x128xf32>
    %cst_2 = arith.constant 0.000000e+00 : f32
    %6 = vector.broadcast %cst_2 : f32 to vector<16x128xf32>
    %7 = arith.maximumf %5, %6 : vector<16x128xf32>
    %c0_3 = arith.constant 0 : index
    %c0_4 = arith.constant 0 : index
    %8 = vector.load %arg3[%c0_3, %c0_4] : memref<8x128xf32, #tpu.memory_space<vmem>>, vector<8x128xf32>
    %9 = vector.shape_cast %7 : vector<16x128xf32> to vector<2x8x128xf32>
    %cst_5 = arith.constant dense<0.000000e+00> : vector<8x128xf32>
    %10 = vector.multi_reduction <add>, %9, %cst_5 [0] : vector<2x8x128xf32> to vector<8x128xf32>
    %11 = arith.addf %8, %10 : vector<8x128xf32>
    %c0_6 = arith.constant 0 : index
    %c0_7 = arith.constant 0 : index
    %12 = vector.load %arg3[%c0_6, %c0_7] : memref<8x128xf32, #tpu.memory_space<vmem>>, vector<8x128xf32>
    tpu.vector_store %arg3[%c0_6, %c0_7], %11 {strides = array<i32>} : memref<8x128xf32, #tpu.memory_space<vmem>>, vector<8x128xf32>,
    %c0_i32_8 = arith.constant 0 : i32
    %13 = arith.cmpi eq, %arg0, %c0_i32_8 : i32
    %14 = arith.extui %13 : i1 to i32
    %c0_i32_9 = arith.constant 0 : i32
    %15 = arith.cmpi ne, %14, %c0_i32_9 : i32
    scf.if %15 {
      %c0_10 = arith.constant 0 : index
      %c0_11 = arith.constant 0 : index
      %16 = vector.load %arg3[%c0_10, %c0_11] : memref<8x128xf32, #tpu.memory_space<vmem>>, vector<8x128xf32>
      %17 = vector.shape_cast %16 : vector<8x128xf32> to vector<1x8x128xf32>
      %cst_12 = arith.constant dense<0.000000e+00> : vector<1xf32>
      %18 = vector.multi_reduction <add>, %17, %cst_12 [1, 2] : vector<1x8x128xf32> to vector<1xf32>
      %19 = vector.shape_cast %18 : vector<1xf32> to vector<1x1x1xf32>
      %20 = vector.extract %19[0, 0, 0] : f32 from vector<1x1x1xf32>
      %cst_13 = arith.constant 0.000000e+00 : f32
      %21 = arith.subf %cst_13, %20 : f32
      %cst_14 = arith.constant 4.8828125E-4 : f32
      %22 = arith.mulf %21, %cst_14 : f32
      %c0_15 = arith.constant 0 : index
      %c0_16 = arith.constant 0 : index
      %23 = memref.load %arg2[%c0_15, %c0_16] : memref<1x1xf32, #tpu.memory_space<smem>>
      memref.store %22, %arg2[%c0_15, %c0_16] : memref<1x1xf32, #tpu.memory_space<smem>>
    } else {
    }
    return
  }
  func.func @transform_0(%arg0: i32) -> (i32, i32) {
    %c0_i32 = arith.constant 0 : i32
    %c0_i32_0 = arith.constant 0 : i32
    return %arg0, %c0_i32 : i32, i32
  }
  func.func @transform_1(%arg0: i32) -> (i32, i32) {
    %c0_i32 = arith.constant 0 : i32
    %c0_i32_0 = arith.constant 0 : i32
    %c0_i32_1 = arith.constant 0 : i32
    return %c0_i32, %c0_i32_0 : i32, i32
  }
}

</mosaic_0001>

<llo_original>
// kernel: tpu_custom_call.1
$region0: #{tpu_custom_call.1}
  #allocation0 [shape = 'u32[]', space=smem, size = 0x4, offset = 0x4, fixed_abs, tag = 'smem constant byte address 0x4 - core index']
  #allocation1 [shape = 'u32[72,128]{1,0:T(1,128)}', space=vmem, size = 0x9000, scoped, tag = 'internal scratch']
  #allocation2 [shape = 'f32[8,128]{1,0:T(8,128)}', space=vmem, size = 0x1000, scoped, tag = 'scratch operand']
  %s0 = inlined_call_operand.hbm [shape: f32[16,128], index: 0, kind: input, shape index: {}]
  %s1 = inlined_call_operand.hbm [shape: f32[1,1], index: 1, kind: output, shape index: {}]
  %s2 = sld [smem:[#allocation0]]
  $region26: #{tpu_custom_call.1} parent=0
    _
  %s4 = ssub.s32 1, %s2
  %s5 = scalar_select 0, %s4, %s2
  $region1: #{tpu_custom_call.1} parent=0
    #allocation3 [shape = 'u8[8192]{0}', space=vmem, size = 0x2000, scoped, tag = 'input window, operand 0, single buffered']
    #allocation4 [shape = 's32[1]{0}', space=sflag, size = 0x4, scoped, tag = 'scoped memory for tpu_custom_call.1']
    #allocation5 [shape = 's32[1]{0}', space=sflag, size = 0x4, scoped, tag = 'scoped memory for tpu_custom_call.1']
    #allocation6 [shape = 'u8[512]{0}', space=smem, size = 0x200, scoped, tag = 'output window, operand 0, single buffered']
    %6 = vsyncpa [#allocation4], 0
    %7 = vsyncpa [#allocation5], 0
    // Predicated region
    $region2: #{tpu_custom_call.1} parent=1 // pred_check
      _
    $region3: #{tpu_custom_call.1} parent=1 // pred_check_branch
      %9 = sbr.rel (0) target = $region5
    $region4: #{tpu_custom_call.1} parent=1 // pred_region
      %11 = vsyncadd [#allocation4], 0
      %s12 = sshll.u32 %s0, 4
      %s13 = int_to_ptr.hbm [resolvable:$true] %s12
      %s14 = sshll.u32 [#allocation3], 4
      %s15 = int_to_ptr.vmem [resolvable:$true] %s14
      %20 = dma.hbm_to_vmem [thread:$0]  %s13, 256, %s15, [#allocation4], 128, 128, 8
    $region5: #{tpu_custom_call.1} parent=1 // pred_fallthru
      _
    // Predicated region
    $region6: #{tpu_custom_call.1} parent=1 // pred_check
      _
    $region7: #{tpu_custom_call.1} parent=1 // pred_check_branch
      %22 = sbr.rel (0) target = $region9
    $region8: #{tpu_custom_call.1} parent=1 // pred_region
      %24 = dma.done [#allocation4], 256
    $region9: #{tpu_custom_call.1} parent=1 // pred_fallthru
      _
    %p25 = scmp.eq.s32.totalorder 0, 0
    // Predicated region
    $region10: #{tpu_custom_call.1} parent=1 // pred_check
      %p26 = pneg %p25
    $region11: #{tpu_custom_call.1} parent=1 // pred_check_branch
      %28 = sbr.rel (%p26) target = $region13
    $region12: #{tpu_custom_call.1} parent=1 // pred_region
      %29 = vst [vmem:[#allocation2] sm:$0xff] 0.0
    $region13: #{tpu_custom_call.1} parent=1 // pred_fallthru
      _
    %v30 = vld [vmem:[#allocation3] sm:$0xff]
    %v31 = vld [vmem:[#allocation3 + $0x8] sm:$0xff]
    %v32 = vsub.f32 0.0, %v30
    %v33 = vsub.f32 0.0, %v31
    %v34 = vmax.f32 %v32, 0.0
    %v35 = vmax.f32 %v33, 0.0
    %v36 = vld [vmem:[#allocation2] sm:$0xff]
    %v37 = vadd.f32 %v34, %v35
    %v38 = vadd.f32 %v36, %v37
    %39 = vst [vmem:[#allocation2] sm:$0xff] %v38
    // Predicated region
    $region14: #{tpu_custom_call.1} parent=1 // pred_check
      %p40 = pneg %p25
    $region15: #{tpu_custom_call.1} parent=1 // pred_check_branch
      %42 = sbr.rel (%p40) target = $region17
    $region16: #{tpu_custom_call.1} parent=1 // pred_region
      %v43 = vld [vmem:[#allocation2] sm:$0xff]
      %44 = vadd.xlane.f32.xlu0 %v43
      %v45 = vpop.xlane.xlu0 %44
      %v46 = vrot.slane %v45, 4
      %v47 = vadd.f32 %v45, %v46
      %v48 = vrot.slane %v47, 2
      %v49 = vadd.f32 %v47, %v48
      %v50 = vrot.slane %v49, 1
      %v51 = vadd.f32 %v49, %v50
      %s52 = vtos %v51
      %s53 = ssub.f32 0.0, %s52
      %s54 = smul.f32 %s53, 0.00048828125
      %s55 = scalar_lea.smem [#allocation6], 0
      %56 = sst [smem:[%s55]] %s54
    $region17: #{tpu_custom_call.1} parent=1 // pred_fallthru
      _
    // Predicated region
    $region18: #{tpu_custom_call.1} parent=1 // pred_check
      _
    $region19: #{tpu_custom_call.1} parent=1 // pred_check_branch
      %58 = sbr.rel (0) target = $region21
    $region20: #{tpu_custom_call.1} parent=1 // pred_region
      %60 = vsyncadd [#allocation5], 0
      %s62 = sshll.u32 %s1, 4
      %s63 = int_to_ptr.hbm [resolvable:$true] %s62
      %65 = dma.smem_to_hbm [#allocation6], 16, %s63, [#allocation5]
    $region21: #{tpu_custom_call.1} parent=1 // pred_fallthru
      _
    // Predicated region
    $region22: #{tpu_custom_call.1} parent=1 // pred_check
      _
    $region23: #{tpu_custom_call.1} parent=1 // pred_check_branch
      %67 = sbr.rel (0) target = $region25
    $region24: #{tpu_custom_call.1} parent=1 // pred_region
      %69 = dma.done [#allocation5], 16
    $region25: #{tpu_custom_call.1} parent=1 // pred_fallthru
      _
    %70 = sfence
    %71 = vsyncpa [#allocation4], 1
    %72 = vsyncpa [#allocation5], 1

</llo_original>
